<compile_context>
chip_gen: v6e
topology: v6e:2x2x1
jax: 0.10.0
libtpu: 0.0.40
codegen_flags: <defaults>
</compile_context>

<pallas_src>
import jax
import jax.numpy as jnp
from jax.experimental import pallas as pl
from jax.experimental.pallas import tpu as pltpu

_EPS = 1e-5


def _layer_norm(x, gamma, beta, eps=_EPS):
    mean = jnp.mean(x, axis=-1, keepdims=True)
    xc = x - mean
    var = jnp.mean(xc * xc, axis=-1, keepdims=True)
    inv = jax.lax.rsqrt(var + eps)
    return xc * inv * gamma + beta


def _pick_tile(size, candidates):
    for c in candidates:
        if size >= c and size % c == 0:
            return c
    return size  # fall back to the full dimension (always a legal block)


# --------------------------------------------------------------------------
# Kernel A: normalize rgb once per tile; emit bf16 rgb and lane-dense ||rgb||^2
# --------------------------------------------------------------------------
def _rgb_prep_kernel(x1_ref, g_ref, b_ref, rgbn_ref, r2_ref):
    x = x1_ref[...].astype(jnp.float32)                       # (TN, d)
    rgb = _layer_norm(x, g_ref[...], b_ref[...])
    rgb_bf = rgb.astype(jnp.bfloat16)
    rgbn_ref[...] = rgb_bf

    # ||rgb_j||^2 as a lane-dense (1, TN) row -- produced with a tiny
    # (1,d)x(d,TN) matmul so no in-kernel transpose is needed; computed from
    # the bf16-rounded values so it is consistent with the cross matmul in
    # kernel B.  This runs once per rgb tile (amortized over all row tiles).
    rgb32 = rgb_bf.astype(jnp.float32)
    ones_row = jnp.ones((1, rgb32.shape[1]), jnp.float32)
    r2_ref[...] = jax.lax.dot_general(
        ones_row, rgb32 * rgb32,
        dimension_numbers=(((1,), (1,)), ((), ())),
        preferred_element_type=jnp.float32)                   # (1, TN)


# --------------------------------------------------------------------------
# Kernel B: tiled (sketch rows x rgb cols) running argmin
# --------------------------------------------------------------------------
def _align_kernel(x2_ref, g_ref, b_ref, rgbn_ref, r2_ref, idx_ref,
                  sket_sc, minv_sc, mini_sc):
    j = pl.program_id(1)
    nj = pl.num_programs(1)

    @pl.when(j == 0)
    def _():
        # normalize this sketch row tile once and cache it; init accumulators
        x2 = x2_ref[...].astype(jnp.float32)
        sket_sc[...] = _layer_norm(x2, g_ref[...], b_ref[...]).astype(jnp.bfloat16)
        minv_sc[...] = jnp.full_like(minv_sc, jnp.inf)
        mini_sc[...] = jnp.zeros_like(mini_sc)

    sket = sket_sc[...]                        # (TQ, d) bf16
    rgb = rgbn_ref[...]                        # (TN, d) bf16

    # cross[i, j] = sket_i . rgb_j  on the MXU (bf16 in, f32 accumulate)
    cross = jax.lax.dot_general(
        sket, rgb,
        dimension_numbers=(((1,), (1,)), ((), ())),
        preferred_element_type=jnp.float32)    # (TQ, TN)

    # ||sket_i||^2 and sqrt are dropped: monotone per row, argmin unchanged.
    score = r2_ref[...] - 2.0 * cross          # (1,TN) bcast + (TQ,TN)

    tn = score.shape[1]
    col = jax.lax.broadcasted_iota(jnp.int32, score.shape, 1) + j * tn
    local_min = jnp.min(score, axis=1, keepdims=True)                 # (TQ,1)
    big = jnp.int32(jnp.iinfo(jnp.int32).max)
    local_idx = jnp.min(jnp.where(score == local_min, col, big),
                        axis=1, keepdims=True)                        # (TQ,1)

    # strict '<' keeps the earlier (first-occurrence) index on ties, matching
    # torch.min; within a tile the iota-min above already picks the first.
    better = local_min < minv_sc[...]
    mini_sc[...] = jnp.where(better, local_idx, mini_sc[...])
    minv_sc[...] = jnp.where(better, local_min, minv_sc[...])

    @pl.when(j == nj - 1)
    def _():
        idx_ref[...] = mini_sc[...]


# --------------------------------------------------------------------------
# Wrapper
# --------------------------------------------------------------------------
def similar_align(x1, x2, gamma1, beta1, gamma2, beta2):
    """x1 (rgb): (m, d), x2 (sketch): (n, d) with m == n.
    Returns int32 indices of shape (n, 1)."""
    m, d = x1.shape
    n, d2 = x2.shape
    assert d == d2 and m == n, "euclidean_dist in the reference requires m == n"

    g1 = gamma1.reshape(1, d).astype(jnp.float32)
    b1 = beta1.reshape(1, d).astype(jnp.float32)
    g2 = gamma2.reshape(1, d).astype(jnp.float32)
    b2 = beta2.reshape(1, d).astype(jnp.float32)

    # Tile sizes: keep the (TQ, TN) f32 score tile plus double-buffered input
    # tiles comfortably under the 32 MiB scoped-VMEM limit (safe on v5e/v6e
    # 128 MiB and v7x 64 MiB physical VMEM).
    tn = _pick_tile(m, (512, 256, 128, 64, 32, 16, 8))   # rgb-column tile
    tq = _pick_tile(n, (256, 128, 64, 32, 16, 8))        # sketch-row tile
    vmem_limit = 32 * 1024 * 1024

    # --- kernel A: rgb preprocessing (LayerNorm once + ||rgb||^2 row) -------
    rgb_bf, r2_row = pl.pallas_call(
        _rgb_prep_kernel,
        out_shape=(jax.ShapeDtypeStruct((m, d), jnp.bfloat16),
                   jax.ShapeDtypeStruct((1, m), jnp.float32)),
        grid=(m // tn,),
        in_specs=[
            pl.BlockSpec((tn, d), lambda jt: (jt, 0)),
            pl.BlockSpec((1, d), lambda jt: (0, 0)),
            pl.BlockSpec((1, d), lambda jt: (0, 0)),
        ],
        out_specs=(
            pl.BlockSpec((tn, d), lambda jt: (jt, 0)),
            pl.BlockSpec((1, tn), lambda jt: (0, jt)),
        ),
        compiler_params=pltpu.CompilerParams(
            dimension_semantics=("parallel",),
            vmem_limit_bytes=vmem_limit),
    )(x1, g1, b1)

    # --- kernel B: tiled running argmin over rgb columns --------------------
    idx = pl.pallas_call(
        _align_kernel,
        out_shape=jax.ShapeDtypeStruct((n, 1), jnp.int32),
        grid=(n // tq, m // tn),
        in_specs=[
            pl.BlockSpec((tq, d), lambda i, jt: (i, 0)),    # raw sketch rows
            pl.BlockSpec((1, d), lambda i, jt: (0, 0)),     # sket gamma
            pl.BlockSpec((1, d), lambda i, jt: (0, 0)),     # sket beta
            pl.BlockSpec((tn, d), lambda i, jt: (jt, 0)),   # normalized rgb (bf16)
            pl.BlockSpec((1, tn), lambda i, jt: (0, jt)),   # ||rgb||^2 row
        ],
        out_specs=pl.BlockSpec((tq, 1), lambda i, jt: (i, 0)),
        scratch_shapes=[
            pltpu.VMEM((tq, d), jnp.bfloat16),   # cached normalized sketch tile
            pltpu.VMEM((tq, 1), jnp.float32),    # running min value
            pltpu.VMEM((tq, 1), jnp.int32),      # running argmin
        ],
        compiler_params=pltpu.CompilerParams(
            dimension_semantics=("parallel", "arbitrary"),
            vmem_limit_bytes=vmem_limit),
    )(x2, g2, b2, rgb_bf, r2_row)

    return idx


# --------------------------------------------------------------------------
# Pure-JAX mirror of the kernel math (same bf16 rounding) — smoke-test oracle.
# --------------------------------------------------------------------------
def _reference_index(x1, x2, gamma1, beta1, gamma2, beta2):
    rgb = _layer_norm(x1.astype(jnp.float32),
                      gamma1.reshape(1, -1), beta1.reshape(1, -1))
    sket = _layer_norm(x2.astype(jnp.float32),
                       gamma2.reshape(1, -1), beta2.reshape(1, -1))
    rgb = rgb.astype(jnp.bfloat16).astype(jnp.float32)
    sket = sket.astype(jnp.bfloat16).astype(jnp.float32)
    r2 = jnp.sum(rgb * rgb, axis=-1)
    cross = sket @ rgb.T
    score = r2[None, :] - 2.0 * cross
    return jnp.argmin(score, axis=1).astype(jnp.int32)[:, None]


if __name__ == "__main__":
    m = n = 8      # number of rgb / sketch feature rows (m == n required)
    dim = 32       # feature dimension (LayerNorm dim)

    key = jax.random.PRNGKey(0)
    k1, k2 = jax.random.split(key)
    x1 = jax.random.normal(k1, (m, dim), dtype=jnp.float32)   # rgb features
    x2 = jax.random.normal(k2, (n, dim), dtype=jnp.float32)   # sketch features

    # nn.LayerNorm default init: weight = 1, bias = 0 (deterministic).
    gamma1 = jnp.ones((dim,), jnp.float32)
    beta1 = jnp.zeros((dim,), jnp.float32)
    gamma2 = jnp.ones((dim,), jnp.float32)
    beta2 = jnp.zeros((dim,), jnp.float32)

    idx = similar_align(x1, x2, gamma1, beta1, gamma2, beta2)
    idx = jax.block_until_ready(idx)
    assert idx.shape == (n, 1) and idx.dtype == jnp.int32

    ref = _reference_index(x1, x2, gamma1, beta1, gamma2, beta2)
    assert jnp.array_equal(idx, ref), (idx.ravel(), ref.ravel())

    print("KERNEL_OK")
</pallas_src>

<mosaic_0001>
module attributes {stable_mosaic.version = 11 : i64} {
  func.func @_rgb_prep_kernel(%arg0: i32, %arg1: memref<8x32xf32, #tpu.memory_space<vmem>>, %arg2: memref<1x32xf32, #tpu.memory_space<vmem>>, %arg3: memref<1x32xf32, #tpu.memory_space<vmem>>, %arg4: memref<8x32xbf16, #tpu.memory_space<vmem>>, %arg5: memref<1x8xf32, #tpu.memory_space<vmem>>) attributes {dimension_semantics = [#tpu.dimension_semantics<parallel>], iteration_bounds = array<i64: 1>, scalar_prefetch = 0 : i64, scratch_operands = 0 : i64, tpu.core_type = #tpu.core_type<tc>, window_params = [{transform_indices = @transform_0, window_bounds = array<i64: 8, 32>}, {pipeline_mode = #tpu.pipeline_mode<synchronous>, transform_indices = @transform_1, window_bounds = array<i64: 1, 32>}, {pipeline_mode = #tpu.pipeline_mode<synchronous>, transform_indices = @transform_2, window_bounds = array<i64: 1, 32>}, {transform_indices = @transform_3, window_bounds = array<i64: 8, 32>}, {transform_indices = @transform_4, window_bounds = array<i64: 1, 8>}]} {
    %c0 = arith.constant 0 : index
    %c0_0 = arith.constant 0 : index
    %0 = vector.load %arg1[%c0, %c0_0] : memref<8x32xf32, #tpu.memory_space<vmem>>, vector<8x32xf32>
    %c0_1 = arith.constant 0 : index
    %c0_2 = arith.constant 0 : index
    %1 = vector.load %arg2[%c0_1, %c0_2] : memref<1x32xf32, #tpu.memory_space<vmem>>, vector<1x32xf32>
    %c0_3 = arith.constant 0 : index
    %c0_4 = arith.constant 0 : index
    %2 = vector.load %arg3[%c0_3, %c0_4] : memref<1x32xf32, #tpu.memory_space<vmem>>, vector<1x32xf32>
    %cst = arith.constant dense<0.000000e+00> : vector<8xf32>
    %3 = vector.multi_reduction <add>, %0, %cst [1] : vector<8x32xf32> to vector<8xf32>
    %4 = vector.shape_cast %3 : vector<8xf32> to vector<8x1xf32>
    %cst_5 = arith.constant 3.200000e+01 : f32
    %5 = vector.broadcast %cst_5 : f32 to vector<8x1xf32>
    %6 = arith.divf %4, %5 : vector<8x1xf32>
    %7 = vector.broadcast %6 : vector<8x1xf32> to vector<8x32xf32>
    %8 = arith.subf %0, %7 : vector<8x32xf32>
    %9 = arith.mulf %8, %8 : vector<8x32xf32>
    %cst_6 = arith.constant dense<0.000000e+00> : vector<8xf32>
    %10 = vector.multi_reduction <add>, %9, %cst_6 [1] : vector<8x32xf32> to vector<8xf32>
    %11 = vector.shape_cast %10 : vector<8xf32> to vector<8x1xf32>
    %cst_7 = arith.constant 3.200000e+01 : f32
    %12 = vector.broadcast %cst_7 : f32 to vector<8x1xf32>
    %13 = arith.divf %11, %12 : vector<8x1xf32>
    %cst_8 = arith.constant 9.99999974E-6 : f32
    %14 = vector.broadcast %cst_8 : f32 to vector<8x1xf32>
    %15 = arith.addf %13, %14 : vector<8x1xf32>
    %16 = math.rsqrt %15 : vector<8x1xf32>
    %17 = vector.broadcast %16 : vector<8x1xf32> to vector<8x32xf32>
    %18 = arith.mulf %8, %17 : vector<8x32xf32>
    %19 = vector.broadcast %1 : vector<1x32xf32> to vector<8x32xf32>
    %20 = arith.mulf %18, %19 : vector<8x32xf32>
    %21 = vector.broadcast %2 : vector<1x32xf32> to vector<8x32xf32>
    %22 = arith.addf %20, %21 : vector<8x32xf32>
    %23 = arith.truncf %22 : vector<8x32xf32> to vector<8x32xbf16>
    %c0_9 = arith.constant 0 : index
    %c0_10 = arith.constant 0 : index
    %24 = vector.load %arg4[%c0_9, %c0_10] : memref<8x32xbf16, #tpu.memory_space<vmem>>, vector<8x32xbf16>
    tpu.vector_store %arg4[%c0_9, %c0_10], %23 {strides = array<i32>} : memref<8x32xbf16, #tpu.memory_space<vmem>>, vector<8x32xbf16>,
    %25 = arith.extf %23 : vector<8x32xbf16> to vector<8x32xf32>
    %cst_11 = arith.constant 1.000000e+00 : f32
    %26 = vector.broadcast %cst_11 : f32 to vector<1x32xf32>
    %27 = arith.mulf %25, %25 : vector<8x32xf32>
    %cst_12 = arith.constant dense<0.000000e+00> : vector<1x8xf32>
    %28 = tpu.matmul %26, %27, %cst_12 {dimension_numbers = #tpu.dot_dimension_numbers<[1], [1], [0], [0], [0, 0, 1, 0], [], []>} : vector<1x32xf32>, vector<8x32xf32>, vector<1x8xf32> -> vector<1x8xf32>
    %c0_13 = arith.constant 0 : index
    %c0_14 = arith.constant 0 : index
    %29 = vector.load %arg5[%c0_13, %c0_14] : memref<1x8xf32, #tpu.memory_space<vmem>>, vector<1x8xf32>
    tpu.vector_store %arg5[%c0_13, %c0_14], %28 {strides = array<i32>} : memref<1x8xf32, #tpu.memory_space<vmem>>, vector<1x8xf32>,
    return
  }
  func.func @transform_0(%arg0: i32) -> (i32, i32) {
    %c0_i32 = arith.constant 0 : i32
    %c0_i32_0 = arith.constant 0 : i32
    return %arg0, %c0_i32 : i32, i32
  }
  func.func @transform_1(%arg0: i32) -> (i32, i32) {
    %c0_i32 = arith.constant 0 : i32
    %c0_i32_0 = arith.constant 0 : i32
    %c0_i32_1 = arith.constant 0 : i32
    return %c0_i32, %c0_i32_0 : i32, i32
  }
  func.func @transform_2(%arg0: i32) -> (i32, i32) {
    %c0_i32 = arith.constant 0 : i32
    %c0_i32_0 = arith.constant 0 : i32
    %c0_i32_1 = arith.constant 0 : i32
    return %c0_i32, %c0_i32_0 : i32, i32
  }
  func.func @transform_3(%arg0: i32) -> (i32, i32) {
    %c0_i32 = arith.constant 0 : i32
    %c0_i32_0 = arith.constant 0 : i32
    return %arg0, %c0_i32 : i32, i32
  }
  func.func @transform_4(%arg0: i32) -> (i32, i32) {
    %c0_i32 = arith.constant 0 : i32
    %c0_i32_0 = arith.constant 0 : i32
    return %c0_i32, %arg0 : i32, i32
  }
}

</mosaic_0001>

<llo_original>
// kernel: tpu_custom_call.1
$region0: #{tpu_custom_call.1}
  #allocation0 [shape = 'u32[]', space=smem, size = 0x4, offset = 0x4, fixed_abs, tag = 'smem constant byte address 0x4 - core index']
  #allocation1 [shape = 'u32[144,128]{1,0:T(1,128)}', space=vmem, size = 0x12000, scoped, tag = 'internal scratch']
  %s0 = inlined_call_operand.hbm [shape: f32[8,32], index: 0, kind: input, shape index: {}]
  %s1 = inlined_call_operand.vmem [shape: f32[1,32], index: 1, kind: input, shape index: {}]
  %s2 = inlined_call_operand.vmem [shape: f32[1,32], index: 2, kind: input, shape index: {}]
  %s3 = inlined_call_operand.hbm [shape: bf16[8,32], index: 3, kind: output, shape index: {0}]
  %s4 = inlined_call_operand.hbm [shape: f32[1,8], index: 4, kind: output, shape index: {1}]
  %5 = xla_tuple %s3, %s4
  %s6 = sld [smem:[#allocation0]]
  $region34: #{tpu_custom_call.1} parent=0
    _
  %s8 = ssub.s32 1, %s6
  %s9 = scalar_select 0, %s8, %s6
  $region1: #{tpu_custom_call.1} parent=0
    #allocation2 [shape = 'u8[4096]{0}', space=vmem, size = 0x1000, scoped, tag = 'input window, operand 0, single buffered']
    #allocation3 [shape = 's32[1]{0}', space=sflag, size = 0x4, scoped, tag = 'scoped memory for tpu_custom_call.1']
    #allocation4 [shape = 's32[1]{0}', space=sflag, size = 0x4, scoped, tag = 'scoped memory for tpu_custom_call.1']
    #allocation5 [shape = 'u8[2048]{0}', space=vmem, size = 0x800, scoped, tag = 'output window, operand 0, single buffered']
    #allocation6 [shape = 'u8[512]{0}', space=vmem, size = 0x400, scoped, tag = 'output window, operand 1, single buffered']
    #allocation7 [shape = 's32[1]{0}', space=sflag, size = 0x4, scoped, tag = 'scoped memory for tpu_custom_call.1']
    %10 = vsyncpa [#allocation3], 0
    %11 = vsyncpa [#allocation4], 0
    %12 = vsyncpa [#allocation7], 0
    // Predicated region
    $region2: #{tpu_custom_call.1} parent=1 // pred_check
      _
    $region3: #{tpu_custom_call.1} parent=1 // pred_check_branch
      %14 = sbr.rel (0) target = $region5
    $region4: #{tpu_custom_call.1} parent=1 // pred_region
      %s16 = ssub.s32 128, 128
      %17 = vsyncadd [#allocation3], %s16
      %s19 = sshll.u32 [#allocation2], 4
      %s20 = int_to_ptr.vmem [resolvable:$true] %s19
      %22 = dma.hbm_to_vmem [thread:$0]  %s0, 128, %s20, [#allocation3]
    $region5: #{tpu_custom_call.1} parent=1 // pred_fallthru
      _
    // Predicated region
    $region6: #{tpu_custom_call.1} parent=1 // pred_check
      _
    $region7: #{tpu_custom_call.1} parent=1 // pred_check_branch
      %24 = sbr.rel (0) target = $region9
    $region8: #{tpu_custom_call.1} parent=1 // pred_region
      _
    $region9: #{tpu_custom_call.1} parent=1 // pred_fallthru
      _
    // Predicated region
    $region10: #{tpu_custom_call.1} parent=1 // pred_check
      _
    $region11: #{tpu_custom_call.1} parent=1 // pred_check_branch
      %26 = sbr.rel (0) target = $region13
    $region12: #{tpu_custom_call.1} parent=1 // pred_region
      _
    $region13: #{tpu_custom_call.1} parent=1 // pred_fallthru
      _
    // Predicated region
    $region14: #{tpu_custom_call.1} parent=1 // pred_check
      _
    $region15: #{tpu_custom_call.1} parent=1 // pred_check_branch
      %28 = sbr.rel (0) target = $region17
    $region16: #{tpu_custom_call.1} parent=1 // pred_region
      %29 = dma.done [#allocation3], 128
    $region17: #{tpu_custom_call.1} parent=1 // pred_fallthru
      _
    %v30 = vld [vmem:[#allocation2] sm:$0xff]
    %v31 = vld [vmem:[%s1] sm:$0x1]
    %v32 = vld [vmem:[%s2] sm:$0x1]
    %vm33 = vcmask 261120
    %v34 = vsel %vm33, %v30, 0.0
    %35 = vadd.xlane.f32.xlu0 %v34
    %v36 = vpop.xlane.xlu0 %35
    %v37 = vrcp.pop 32.0
    %v38 = vmul.f32 %v36, %v37
    %v39 = vsub.f32 %v30, %v38
    %v40 = vmul.f32 %v39, %v39
    %v41 = vsel %vm33, %v40, 0.0
    %42 = vadd.xlane.f32.xlu0 %v41
    %v43 = vpop.xlane.xlu0 %42
    %v44 = vmul.f32 %v43, %v37
    %v45 = vadd.f32 %v44, 1e-05
    %v46 = vrsqrt.pop %v45
    %v47 = vmul.f32 %v39, %v46
    %v49 = vlaneseq
    %v50 = vshrl.u32 %v49, 7
    %v51 = vsub.s32 0, %v50
    %v52 = vrot.slane %v31, %v51
    %v54 = vmul.f32 %v47, %v52
    %v56 = vlaneseq
    %v57 = vshrl.u32 %v56, 7
    %v58 = vsub.s32 0, %v57
    %v59 = vrot.slane %v32, %v58
    %v61 = vadd.f32 %v54, %v59
    %v62 = vpack.c.bf16 %v61, %v61
    %vm63 = vcmask 257024
    %64 = vst.msk [vmem:[#allocation5] sm:$0xf] %vm63, %v62
    %v65 = vunpack.c.l.bf16 %v62
    %v66 = vmul.f32 %v65, %v65
    %v68 = vsel %vm33, 1.0, 0
    %v71 = vsel %vm33, %v66, 0
    %73 = vmatprep.subr.mxu0 0.0
    %74 = vmatpush1.xpose.msra.mxu0 0.0
    %75 = vmatprep.subr.mxu0 0.0
    %76 = vmatpush1.xpose.msra.mxu0 0.0
    %77 = vmatprep.subr.mxu0 0.0
    %78 = vmatpush1.xpose.msra.mxu0 0.0
    %79 = vmatprep.subr.mxu0 0.0
    %80 = vmatpush1.xpose.msra.mxu0 0.0
    %81 = vmatprep.subr.mxu0 0.0
    %82 = vmatpush1.xpose.msra.mxu0 0.0
    %83 = vmatprep.subr.mxu0 0.0
    %84 = vmatpush1.xpose.msra.mxu0 0.0
    %85 = vmatprep.subr.mxu0 0.0
    %86 = vmatpush1.xpose.msra.mxu0 0.0
    %87 = vmatprep.subr.mxu0 0.0
    %88 = vmatpush1.xpose.msra.mxu0 0.0
    %89 = vmatprep.subr.mxu0 0.0
    %90 = vmatpush1.xpose.msra.mxu0 0.0
    %91 = vmatprep.subr.mxu0 0.0
    %92 = vmatpush1.xpose.msra.mxu0 0.0
    %93 = vmatprep.subr.mxu0 0.0
    %94 = vmatpush1.xpose.msra.mxu0 0.0
    %95 = vmatprep.subr.mxu0 0.0
    %96 = vmatpush1.xpose.msra.mxu0 0.0
    %97 = vmatprep.subr.mxu0 0.0
    %98 = vmatpush1.xpose.msra.mxu0 0.0
    %99 = vmatprep.subr.mxu0 0.0
    %100 = vmatpush1.xpose.msra.mxu0 0.0
    %101 = vmatprep.subr.mxu0 0.0
    %102 = vmatpush1.xpose.msra.mxu0 0.0
    %103 = vmatprep.subr.mxu0 0.0
    %104 = vmatpush1.xpose.msra.mxu0 %v71
    %105 = vmatprep.subr.mxu0 0.0
    %106 = vmatpush2.xpose.msra.mxu0 0.0
    %107 = vmatprep.subr.mxu0 0.0
    %108 = vmatpush2.xpose.msra.mxu0 0.0
    %109 = vmatprep.subr.mxu0 0.0
    %110 = vmatpush2.xpose.msra.mxu0 0.0
    %111 = vmatprep.subr.mxu0 0.0
    %112 = vmatpush2.xpose.msra.mxu0 0.0
    %113 = vmatprep.subr.mxu0 0.0
    %114 = vmatpush2.xpose.msra.mxu0 0.0
    %115 = vmatprep.subr.mxu0 0.0
    %116 = vmatpush2.xpose.msra.mxu0 0.0
    %117 = vmatprep.subr.mxu0 0.0
    %118 = vmatpush2.xpose.msra.mxu0 0.0
    %119 = vmatprep.subr.mxu0 0.0
    %120 = vmatpush2.xpose.msra.mxu0 0.0
    %121 = vmatprep.subr.mxu0 0.0
    %122 = vmatpush2.xpose.msra.mxu0 0.0
    %123 = vmatprep.subr.mxu0 0.0
    %124 = vmatpush2.xpose.msra.mxu0 0.0
    %125 = vmatprep.subr.mxu0 0.0
    %126 = vmatpush2.xpose.msra.mxu0 0.0
    %127 = vmatprep.subr.mxu0 0.0
    %128 = vmatpush2.xpose.msra.mxu0 0.0
    %129 = vmatprep.subr.mxu0 0.0
    %130 = vmatpush2.xpose.msra.mxu0 0.0
    %131 = vmatprep.subr.mxu0 0.0
    %132 = vmatpush2.xpose.msra.mxu0 0.0
    %133 = vmatprep.subr.mxu0 0.0
    %134 = vmatpush2.xpose.msra.mxu0 0.0
    %135 = vmatprep.subr.mxu0 0.0
    %136 = vmatpush2.xpose.msra.mxu0 0.0
    %137 = vmatprep.mubr.f32.mxu0 0.0
    %138 = vmatmul.mubr.f32.gmra.mxu0 %v68
    %v139 = vpop.f32.mrf.mxu0
    %v140 = vadd.f32 0.0, %v139
    %v141 = vpop.f32.mrf.mxu0
    %142 = vdwg.mxu0
    %vm143 = vcmask 57344
    %144 = vst.msk [vmem:[#allocation6] sm:$0x1] %vm143, %v140
    // Predicated region
    $region18: #{tpu_custom_call.1} parent=1 // pred_check
      _
    $region19: #{tpu_custom_call.1} parent=1 // pred_check_branch
      %146 = sbr.rel (0) target = $region21
    $region20: #{tpu_custom_call.1} parent=1 // pred_region
      %s148 = ssub.s32 64, 64
      %149 = vsyncadd [#allocation4], %s148
      %s151 = sshll.u32 [#allocation5], 4
      %s152 = int_to_ptr.vmem [resolvable:$true] %s151
      %154 = dma.vmem_to_hbm [thread:$0]  %s152, 64, %s3, [#allocation4]
    $region21: #{tpu_custom_call.1} parent=1 // pred_fallthru
      _
    // Predicated region
    $region22: #{tpu_custom_call.1} parent=1 // pred_check
      _
    $region23: #{tpu_custom_call.1} parent=1 // pred_check_branch
      %156 = sbr.rel (0) target = $region25
    $region24: #{tpu_custom_call.1} parent=1 // pred_region
      %s158 = ssub.s32 16, 16
      %159 = vsyncadd [#allocation7], %s158
      %s161 = sshll.u32 [#allocation6], 4
      %s162 = int_to_ptr.vmem [resolvable:$true] %s161
      %164 = dma.vmem_to_hbm [thread:$0]  %s162, 16, %s4, [#allocation7]
    $region25: #{tpu_custom_call.1} parent=1 // pred_fallthru
      _
    // Predicated region
    $region26: #{tpu_custom_call.1} parent=1 // pred_check
      _
    $region27: #{tpu_custom_call.1} parent=1 // pred_check_branch
      %166 = sbr.rel (0) target = $region29
    $region28: #{tpu_custom_call.1} parent=1 // pred_region
      %167 = dma.done [#allocation4], 64
    $region29: #{tpu_custom_call.1} parent=1 // pred_fallthru
      _
    // Predicated region
    $region30: #{tpu_custom_call.1} parent=1 // pred_check
      _
    $region31: #{tpu_custom_call.1} parent=1 // pred_check_branch
      %169 = sbr.rel (0) target = $region33
    $region32: #{tpu_custom_call.1} parent=1 // pred_region
      %170 = dma.done [#allocation7], 16
    $region33: #{tpu_custom_call.1} parent=1 // pred_fallthru
      _
    %171 = vsyncpa [#allocation3], 1
    %172 = vsyncpa [#allocation4], 1
    %173 = vsyncpa [#allocation7], 1

</llo_original>
